<compile_context>
chip_gen: v5e
topology: v5e:2x2
jax: 0.10.0
libtpu: 0.0.40
codegen_flags: <defaults>
</compile_context>

<pallas_src>
import jax
import jax.numpy as jnp
import numpy as np
from jax.experimental import pallas as pl
from jax.experimental.pallas import tpu as pltpu


def _round_up(v, m):
    return ((v + m - 1) // m) * m


def _tpu_vmem_limit():
    """Per-generation VMEM budget: about half of physical VMEM
    (=> ~64 MiB on v5e/v6e's 128 MiB, ~32 MiB on v7x's 64 MiB)."""
    cap = 128 * 1024 * 1024
    try:
        info = pltpu.get_tpu_info()
        c = getattr(info, "vmem_capacity_bytes", None)
        if c:
            cap = int(c)
    except Exception:
        pass
    return int(min(max(cap // 2, 32 * 1024 * 1024), 100 * 1024 * 1024))


# -----------------------------------------------------------------------------
# Small-image path: dense 2D rDFT (one matmul pair, K = H*W contraction depth).
# -----------------------------------------------------------------------------
def _amp2d_kernel(z_ref, cr_ref, ci_ref, out_ref):
    _, tm, hw = z_ref.shape
    # (2, tm, HW) -> (2*tm, HW): free major-dim merge (tm is a multiple of 8).
    z2 = z_ref[...].reshape(2 * tm, hw)
    re = jnp.dot(z2, cr_ref[...], preferred_element_type=jnp.float32)   # (2*tm, Kc)
    im = jnp.dot(z2, ci_ref[...], preferred_element_type=jnp.float32)
    mag = jnp.sqrt(re * re + im * im)                                   # f32
    d = jnp.abs(mag[:tm] - mag[tm:])                                    # (tm, Kc)
    # Reduce over the image axis in-kernel -> tiny lane-dense (1, Kc) writeback.
    out_ref[...] = jnp.sum(d, axis=0, keepdims=True)


def _dft2d_matrices(H, W, Wf, Kfp):
    """Dense 2D rDFT matrices (H*W, Kfp). Rows are flattened (h, w) pixels,
    columns are densely packed (p, q) frequencies (Kf = H*Wf used columns);
    the padded columns are exactly zero. Angles built in float64 with the
    index products reduced mod the period (precision-safe)."""
    h = np.arange(H, dtype=np.int64)
    p = np.arange(H, dtype=np.int64)
    w = np.arange(W, dtype=np.int64)
    q = np.arange(Wf, dtype=np.int64)
    ph = ((h[:, None] * p[None, :]) % H).astype(np.float64) / H          # (H, H)
    pw = ((w[:, None] * q[None, :]) % W).astype(np.float64) / W          # (W, Wf)
    theta = 2.0 * np.pi * (ph[:, None, :, None] + pw[None, :, None, :])  # (H,W,H,Wf)
    Kf = H * Wf
    cr = np.zeros((H * W, Kfp), np.float32)
    ci = np.zeros((H * W, Kfp), np.float32)
    cr[:, :Kf] = np.cos(theta).reshape(H * W, Kf)
    ci[:, :Kf] = -np.sin(theta).reshape(H * W, Kf)
    return (jnp.asarray(cr, dtype=jnp.bfloat16),
            jnp.asarray(ci, dtype=jnp.bfloat16))


def _amp_loss_dense(xr, yr, M, H, W, Wf, vmem_limit):
    HW = H * W
    Kf = H * Wf
    Kfp = _round_up(Kf, 128)

    # Frequency chunk: multiple of 128 that divides Kfp, at most 512 lanes.
    r = Kfp // 128
    g = 1
    while g < 4 and r % (2 * g) == 0:
        g *= 2
    Kc = 128 * g

    budget = int(0.7 * vmem_limit)

    def step_bytes(t, kc):
        z_in = 2 * (2 * t * HW) * 2           # double-buffered bf16 z blocks
        wts = 2 * 2 * (HW * kc) * 2           # double-buffered bf16 CR/CI chunks
        inter = 10 * t * kc * 4               # re/im/mag/d f32 + slack
        return z_in + wts + inter + 4 * kc

    tm = min(_round_up(M, 8), 128)            # multiple of 8 (sublane alignment)
    while tm > 8 and step_bytes(tm, Kc) > budget:
        tm = _round_up(max(8, tm // 2), 8)
    while Kc > 128 and step_bytes(tm, Kc) > budget:
        Kc //= 2

    Mp = _round_up(M, tm)
    Gm = Mp // tm
    Gf = Kfp // Kc

    # Stack x and y in the wrapper (fuses with the bf16 cast) — no in-kernel
    # concatenate. Padded images are zero and contribute nothing to the sum.
    z = jnp.stack([xr, yr], axis=0).astype(jnp.bfloat16).reshape(2, M, HW)
    if Mp != M:
        z = jnp.pad(z, ((0, 0), (0, Mp - M), (0, 0)))

    cr, ci = _dft2d_matrices(H, W, Wf, Kfp)

    cost = pl.CostEstimate(
        flops=2 * (2 * Mp) * HW * Kfp * 2,
        transcendentals=2 * Mp * Kfp,
        bytes_accessed=2 * Mp * HW * 2 + Gm * 2 * HW * Kfp * 2 + Gm * Kfp * 4)

    partials = pl.pallas_call(
        _amp2d_kernel,
        out_shape=jax.ShapeDtypeStruct((Gm, Kfp), jnp.float32),
        grid_spec=pltpu.PrefetchScalarGridSpec(
            num_scalar_prefetch=0,
            grid=(Gm, Gf),
            in_specs=[
                pl.BlockSpec((2, tm, HW), lambda i, j: (0, i, 0)),  # z (cached over j)
                pl.BlockSpec((HW, Kc), lambda i, j: (0, j)),        # cos 2D-DFT chunk
                pl.BlockSpec((HW, Kc), lambda i, j: (0, j)),        # -sin 2D-DFT chunk
            ],
            out_specs=pl.BlockSpec((1, Kc), lambda i, j: (i, j)),
        ),
        compiler_params=pltpu.CompilerParams(
            dimension_semantics=("parallel", "arbitrary"),
            vmem_limit_bytes=vmem_limit,
        ),
        cost_estimate=cost,
    )(z, cr, ci)

    # Padded lanes / images are exactly zero, so they do not affect the sum.
    return jnp.sum(partials) / (M * H * Wf)


# -----------------------------------------------------------------------------
# Large-image path: separable rDFT (W-stage matmul, then weight-stationary
# H-stage FFT), frequency axis tiled as a second grid dimension.
# -----------------------------------------------------------------------------
def _amp_sep_kernel(z_ref, cw_ref, sw_ref, ch_ref, sh_ref, out_ref):
    _, tm, H, W = z_ref.shape
    wc = cw_ref.shape[1]
    # (2, tm, H, W) -> (2*tm*H, W): free major merge when H is a multiple of 8.
    z2 = z_ref[...].reshape(2 * tm * H, W)
    a = jnp.dot(z2, cw_ref[...], preferred_element_type=jnp.float32)    # (2*tm*H, wc)
    b = jnp.dot(z2, sw_ref[...], preferred_element_type=jnp.float32)
    a3 = a.reshape(2 * tm, H, wc).astype(jnp.bfloat16)
    b3 = b.reshape(2 * tm, H, wc).astype(jnp.bfloat16)
    ch = ch_ref[...]
    sh = sh_ref[...]
    # H-stage FFT with the (H, H) twiddles weight-stationary (no broadcast,
    # no 3-multiply trick): Re = Ch@A + Sh@B, Im = Ch@B - Sh@A.
    re = (jnp.einsum('hk,mkf->hmf', ch, a3, preferred_element_type=jnp.float32)
          + jnp.einsum('hk,mkf->hmf', sh, b3, preferred_element_type=jnp.float32))
    im = (jnp.einsum('hk,mkf->hmf', ch, b3, preferred_element_type=jnp.float32)
          - jnp.einsum('hk,mkf->hmf', sh, a3, preferred_element_type=jnp.float32))
    mag = jnp.sqrt(re * re + im * im)                   # (H, 2*tm, wc)
    d = jnp.abs(mag[:, :tm, :] - mag[:, tm:, :])        # (H, tm, wc)
    part = jnp.sum(d, axis=0)                           # major-axis VPU adds -> (tm, wc)
    out_ref[...] = jnp.sum(part, axis=0, keepdims=True)  # (1, wc) lane-dense


def _dft_sep_matrices(H, W, Wf, Wfp):
    n = np.arange(W, dtype=np.int64)[:, None]
    k = np.arange(Wf, dtype=np.int64)[None, :]
    theta = 2.0 * np.pi * ((n * k) % W).astype(np.float64) / W
    cw = np.zeros((W, Wfp), np.float32)
    sw = np.zeros((W, Wfp), np.float32)
    cw[:, :Wf] = np.cos(theta)
    sw[:, :Wf] = -np.sin(theta)

    h = np.arange(H, dtype=np.int64)[:, None]
    kk = np.arange(H, dtype=np.int64)[None, :]
    phi = 2.0 * np.pi * ((h * kk) % H).astype(np.float64) / H
    ch = np.cos(phi)
    sh = np.sin(phi)

    def to(m):
        return jnp.asarray(m.astype(np.float32), dtype=jnp.bfloat16)

    return to(cw), to(sw), to(ch), to(sh)


def _amp_loss_separable(xr, yr, M, H, W, Wf, vmem_limit):
    # TODO(synk): pack the Nyquist bin into bin 0's zero imaginary column for
    # power-of-two W to drop the remaining lane padding on this path.
    Wfp = _round_up(Wf, 128)

    r = Wfp // 128
    g = 1
    while g < 4 and r % (2 * g) == 0:
        g *= 2
    wc = 128 * g

    budget = int(0.7 * vmem_limit)

    def step_bytes(t, c):
        z_in = 2 * (2 * t * H * W) * 2                     # bf16 z, double-buffered
        wts = 2 * 2 * (W * c) * 2 + 2 * 2 * (H * H) * 2    # Cw/Sw chunks + Ch/Sh
        inter = 80 * t * H * c                             # f32/bf16 intermediates
        return z_in + wts + inter + 4 * c

    tm = max(8, _round_up(max(1, 256 // max(H, 1)), 8))
    tm = min(tm, _round_up(M, 8))
    while tm > 8 and step_bytes(tm, wc) > budget:
        tm = _round_up(max(8, tm // 2), 8)
    while wc > 128 and step_bytes(tm, wc) > budget:
        wc //= 2

    Mp = _round_up(M, tm)
    Gm = Mp // tm
    Gf = Wfp // wc

    z = jnp.stack([xr, yr], axis=0).astype(jnp.bfloat16)   # (2, M, H, W)
    if Mp != M:
        z = jnp.pad(z, ((0, 0), (0, Mp - M), (0, 0), (0, 0)))

    cw, sw, ch, sh = _dft_sep_matrices(H, W, Wf, Wfp)

    cost = pl.CostEstimate(
        flops=2 * (2 * Mp * H) * W * Wfp * 2 + 4 * (2 * Mp) * H * H * Wfp * 2,
        transcendentals=2 * Mp * H * Wfp,
        bytes_accessed=2 * Mp * H * W * 2 + (2 * W * Wfp + 2 * H * H) * 2
                       + Gm * Wfp * 4)

    partials = pl.pallas_call(
        _amp_sep_kernel,
        out_shape=jax.ShapeDtypeStruct((Gm, Wfp), jnp.float32),
        grid_spec=pltpu.PrefetchScalarGridSpec(
            num_scalar_prefetch=0,
            grid=(Gm, Gf),
            in_specs=[
                pl.BlockSpec((2, tm, H, W), lambda i, j: (0, i, 0, 0)),  # z (cached over j)
                pl.BlockSpec((W, wc), lambda i, j: (0, j)),              # cos (W-stage) chunk
                pl.BlockSpec((W, wc), lambda i, j: (0, j)),              # -sin (W-stage) chunk
                pl.BlockSpec((H, H), lambda i, j: (0, 0)),               # cos (H-stage)
                pl.BlockSpec((H, H), lambda i, j: (0, 0)),               # sin (H-stage)
            ],
            out_specs=pl.BlockSpec((1, wc), lambda i, j: (i, j)),
        ),
        compiler_params=pltpu.CompilerParams(
            dimension_semantics=("parallel", "arbitrary"),
            vmem_limit_bytes=vmem_limit,
        ),
        cost_estimate=cost,
    )(z, cw, sw, ch, sh)

    return jnp.sum(partials) / (M * H * Wf)


# -----------------------------------------------------------------------------
# Public entry point (forward pass of AMPLoss).
# -----------------------------------------------------------------------------
def amp_loss(x, y):
    """L1(|rfft2(x)|, |rfft2(y)|) with mean reduction (PyTorch AMPLoss)."""
    assert x.ndim == 4 and x.shape == y.shape
    B, C, H, W = x.shape
    M = B * C
    Wf = W // 2 + 1
    vmem_limit = _tpu_vmem_limit()
    xr = x.reshape(M, H, W)
    yr = y.reshape(M, H, W)
    if H * W <= 4096:
        return _amp_loss_dense(xr, yr, M, H, W, Wf, vmem_limit)
    return _amp_loss_separable(xr, yr, M, H, W, Wf, vmem_limit)


if __name__ == "__main__":
    key = jax.random.PRNGKey(0)
    kx, ky = jax.random.split(key)
    B, C, H, W = 2, 4, 16, 16
    x = jax.random.normal(kx, (B, C, H, W), dtype=jnp.float32)
    y = jax.random.normal(ky, (B, C, H, W), dtype=jnp.float32)

    loss = jax.block_until_ready(amp_loss(x, y))

    # Reference (plain JAX FFT). Tolerance accounts for bf16 MXU inputs
    # (f32 accumulation keeps the error well below this).
    x_mag = jnp.abs(jnp.fft.rfft2(x, norm="backward"))
    y_mag = jnp.abs(jnp.fft.rfft2(y, norm="backward"))
    ref = jnp.mean(jnp.abs(x_mag - y_mag))
    assert np.allclose(np.array(loss), np.array(ref), rtol=5e-3, atol=5e-2), (loss, ref)

    print("KERNEL_OK")
</pallas_src>

<mosaic_0001>
module attributes {stable_mosaic.version = 11 : i64} {
  func.func @_amp2d_kernel(%arg0: i32, %arg1: i32, %arg2: memref<2x8x256xbf16, #tpu.memory_space<vmem>>, %arg3: memref<256x256xbf16, #tpu.memory_space<vmem>>, %arg4: memref<256x256xbf16, #tpu.memory_space<vmem>>, %arg5: memref<1x256xf32, #tpu.memory_space<vmem>>) attributes {dimension_semantics = [#tpu.dimension_semantics<parallel>, #tpu.dimension_semantics<arbitrary>], iteration_bounds = array<i64: 1, 1>, scalar_prefetch = 0 : i64, scratch_operands = 0 : i64, tpu.core_type = #tpu.core_type<tc>, window_params = [{transform_indices = @transform_0, window_bounds = array<i64: 2, 8, 256>}, {transform_indices = @transform_1, window_bounds = array<i64: 256, 256>}, {transform_indices = @transform_2, window_bounds = array<i64: 256, 256>}, {transform_indices = @transform_3, window_bounds = array<i64: 1, 256>}]} {
    %c0 = arith.constant 0 : index
    %c0_0 = arith.constant 0 : index
    %c0_1 = arith.constant 0 : index
    %0 = vector.load %arg2[%c0, %c0_0, %c0_1] : memref<2x8x256xbf16, #tpu.memory_space<vmem>>, vector<2x8x256xbf16>
    %1 = vector.shape_cast %0 : vector<2x8x256xbf16> to vector<16x256xbf16>
    %c0_2 = arith.constant 0 : index
    %c0_3 = arith.constant 0 : index
    %2 = vector.load %arg3[%c0_2, %c0_3] : memref<256x256xbf16, #tpu.memory_space<vmem>>, vector<256x256xbf16>
    %cst = arith.constant dense<0.000000e+00> : vector<16x256xf32>
    %3 = tpu.matmul %1, %2, %cst {dimension_numbers = #tpu.dot_dimension_numbers<[1], [0], [0], [1], [0, 0, 1, 1], [], []>} : vector<16x256xbf16>, vector<256x256xbf16>, vector<16x256xf32> -> vector<16x256xf32>
    %c0_4 = arith.constant 0 : index
    %c0_5 = arith.constant 0 : index
    %4 = vector.load %arg4[%c0_4, %c0_5] : memref<256x256xbf16, #tpu.memory_space<vmem>>, vector<256x256xbf16>
    %cst_6 = arith.constant dense<0.000000e+00> : vector<16x256xf32>
    %5 = tpu.matmul %1, %4, %cst_6 {dimension_numbers = #tpu.dot_dimension_numbers<[1], [0], [0], [1], [0, 0, 1, 1], [], []>} : vector<16x256xbf16>, vector<256x256xbf16>, vector<16x256xf32> -> vector<16x256xf32>
    %6 = arith.mulf %3, %3 : vector<16x256xf32>
    %7 = arith.mulf %5, %5 : vector<16x256xf32>
    %8 = arith.addf %6, %7 : vector<16x256xf32>
    %9 = math.sqrt %8 : vector<16x256xf32>
    %10 = vector.extract_strided_slice %9 {offsets = [0, 0], sizes = [8, 256], strides = [1, 1]} : vector<16x256xf32> to vector<8x256xf32>
    %11 = vector.extract_strided_slice %9 {offsets = [8, 0], sizes = [8, 256], strides = [1, 1]} : vector<16x256xf32> to vector<8x256xf32>
    %12 = arith.subf %10, %11 : vector<8x256xf32>
    %13 = math.absf %12 : vector<8x256xf32>
    %cst_7 = arith.constant dense<0.000000e+00> : vector<256xf32>
    %14 = vector.multi_reduction <add>, %13, %cst_7 [0] : vector<8x256xf32> to vector<256xf32>
    %15 = vector.shape_cast %14 : vector<256xf32> to vector<1x256xf32>
    %c0_8 = arith.constant 0 : index
    %c0_9 = arith.constant 0 : index
    %16 = vector.load %arg5[%c0_8, %c0_9] : memref<1x256xf32, #tpu.memory_space<vmem>>, vector<1x256xf32>
    tpu.vector_store %arg5[%c0_8, %c0_9], %15 {strides = array<i32>} : memref<1x256xf32, #tpu.memory_space<vmem>>, vector<1x256xf32>,
    return
  }
  func.func @transform_0(%arg0: i32, %arg1: i32) -> (i32, i32, i32) {
    %c0_i32 = arith.constant 0 : i32
    %c0_i32_0 = arith.constant 0 : i32
    %c0_i32_1 = arith.constant 0 : i32
    return %c0_i32, %arg0, %c0_i32_0 : i32, i32, i32
  }
  func.func @transform_1(%arg0: i32, %arg1: i32) -> (i32, i32) {
    %c0_i32 = arith.constant 0 : i32
    %c0_i32_0 = arith.constant 0 : i32
    return %c0_i32, %arg1 : i32, i32
  }
  func.func @transform_2(%arg0: i32, %arg1: i32) -> (i32, i32) {
    %c0_i32 = arith.constant 0 : i32
    %c0_i32_0 = arith.constant 0 : i32
    return %c0_i32, %arg1 : i32, i32
  }
  func.func @transform_3(%arg0: i32, %arg1: i32) -> (i32, i32) {
    %c0_i32 = arith.constant 0 : i32
    return %arg0, %arg1 : i32, i32
  }
}

</mosaic_0001>

<llo_original>
// kernel: tpu_custom_call.1
$region0: #{tpu_custom_call.1}
  #allocation0 [shape = 'u32[]', space=smem, size = 0x4, offset = 0x4, fixed_abs, tag = 'smem constant byte address 0x4 - core index']
  #allocation1 [shape = 'u32[72,128]{1,0:T(1,128)}', space=vmem, size = 0x9000, scoped, tag = 'internal scratch']
  %s0 = inlined_call_operand.hbm [shape: bf16[2,8,256], index: 0, kind: input, shape index: {}]
  %s1 = inlined_call_operand.hbm [shape: bf16[256,256], index: 1, kind: input, shape index: {}]
  %s2 = inlined_call_operand.hbm [shape: bf16[256,256], index: 2, kind: input, shape index: {}]
  %s3 = inlined_call_operand.hbm [shape: f32[1,256], index: 3, kind: output, shape index: {}]
  %s4 = sld [smem:[#allocation0]]
  $region34: #{tpu_custom_call.1} parent=0
    _
  %s6 = ssub.s32 1, %s4
  %s7 = scalar_select 0, %s6, %s4
  $region1: #{tpu_custom_call.1} parent=0
    #allocation2 [shape = 'u8[8192]{0}', space=vmem, size = 0x2000, scoped, tag = 'input window, operand 0, single buffered']
    #allocation3 [shape = 's32[1]{0}', space=sflag, size = 0x4, scoped, tag = 'scoped memory for tpu_custom_call.1']
    #allocation4 [shape = 's32[1]{0}', space=sflag, size = 0x4, scoped, tag = 'scoped memory for tpu_custom_call.1']
    #allocation5 [shape = 'u8[131072]{0}', space=vmem, size = 0x20000, scoped, tag = 'input window, operand 1, single buffered']
    #allocation6 [shape = 's32[1]{0}', space=sflag, size = 0x4, scoped, tag = 'scoped memory for tpu_custom_call.1']
    #allocation7 [shape = 'u8[131072]{0}', space=vmem, size = 0x20000, scoped, tag = 'input window, operand 2, single buffered']
    #allocation8 [shape = 'u8[1024]{0}', space=vmem, size = 0x400, scoped, tag = 'output window, operand 0, single buffered']
    %8 = vsyncpa [#allocation3], 0
    %9 = vsyncpa [#allocation6], 0
    %10 = vsyncpa [#allocation4], 0
    // Predicated region
    $region2: #{tpu_custom_call.1} parent=1 // pred_check
      _
    $region3: #{tpu_custom_call.1} parent=1 // pred_check_branch
      %12 = sbr.rel (0) target = $region5
    $region4: #{tpu_custom_call.1} parent=1 // pred_region
      %14 = vsyncadd [#allocation3], 0
      %s15 = sshll.u32 %s0, 4
      %s16 = int_to_ptr.hbm [resolvable:$true] %s15
      %s17 = sshll.u32 [#allocation2], 4
      %s18 = int_to_ptr.vmem [resolvable:$true] %s17
      %23 = dma.hbm_to_vmem [thread:$0]  %s16, 256, %s18, [#allocation3], 128, 128, 8
    $region5: #{tpu_custom_call.1} parent=1 // pred_fallthru
      _
    // Predicated region
    $region6: #{tpu_custom_call.1} parent=1 // pred_check
      _
    $region7: #{tpu_custom_call.1} parent=1 // pred_check_branch
      %25 = sbr.rel (0) target = $region9
    $region8: #{tpu_custom_call.1} parent=1 // pred_region
      %27 = vsyncadd [#allocation6], 0
      %s28 = sshll.u32 %s1, 4
      %s29 = int_to_ptr.hbm [resolvable:$true] %s28
      %s30 = sshll.u32 [#allocation5], 4
      %s31 = int_to_ptr.vmem [resolvable:$true] %s30
      %36 = dma.hbm_to_vmem [thread:$0]  %s29, 4096, %s31, [#allocation6], 128, 128, 8
    $region9: #{tpu_custom_call.1} parent=1 // pred_fallthru
      _
    // Predicated region
    $region10: #{tpu_custom_call.1} parent=1 // pred_check
      _
    $region11: #{tpu_custom_call.1} parent=1 // pred_check_branch
      %38 = sbr.rel (0) target = $region13
    $region12: #{tpu_custom_call.1} parent=1 // pred_region
      %40 = vsyncadd [#allocation6], 0
      %s41 = sshll.u32 %s2, 4
      %s42 = int_to_ptr.hbm [resolvable:$true] %s41
      %s43 = sshll.u32 [#allocation7], 4
      %s44 = int_to_ptr.vmem [resolvable:$true] %s43
      %49 = dma.hbm_to_vmem [thread:$0]  %s42, 4096, %s44, [#allocation6], 128, 128, 8
    $region13: #{tpu_custom_call.1} parent=1 // pred_fallthru
      _
    // Predicated region
    $region14: #{tpu_custom_call.1} parent=1 // pred_check
      _
    $region15: #{tpu_custom_call.1} parent=1 // pred_check_branch
      %51 = sbr.rel (0) target = $region17
    $region16: #{tpu_custom_call.1} parent=1 // pred_region
      %53 = dma.done [#allocation3], 256
    $region17: #{tpu_custom_call.1} parent=1 // pred_fallthru
      _
    // Predicated region
    $region18: #{tpu_custom_call.1} parent=1 // pred_check
      _
    $region19: #{tpu_custom_call.1} parent=1 // pred_check_branch
      %55 = sbr.rel (0) target = $region21
    $region20: #{tpu_custom_call.1} parent=1 // pred_region
      %57 = dma.done [#allocation6], 4096
    $region21: #{tpu_custom_call.1} parent=1 // pred_fallthru
      _
    // Predicated region
    $region22: #{tpu_custom_call.1} parent=1 // pred_check
      _
    $region23: #{tpu_custom_call.1} parent=1 // pred_check_branch
      %59 = sbr.rel (0) target = $region25
    $region24: #{tpu_custom_call.1} parent=1 // pred_region
      %61 = dma.done [#allocation6], 4096
    $region25: #{tpu_custom_call.1} parent=1 // pred_fallthru
      _
    %v62 = vld [vmem:[#allocation2] sm:$0xff]
    %v63 = vld [vmem:[#allocation2 + $0x8] sm:$0xff]
    %v64 = vld [vmem:[#allocation5] sm:$0xff]
    %v65 = vld [vmem:[#allocation5 + $0x8] sm:$0xff]
    %v66 = vld [vmem:[#allocation5 + $0x10] sm:$0xff]
    %v67 = vld [vmem:[#allocation5 + $0x18] sm:$0xff]
    %v68 = vld [vmem:[#allocation5 + $0x20] sm:$0xff]
    %v69 = vld [vmem:[#allocation5 + $0x28] sm:$0xff]
    %v70 = vld [vmem:[#allocation5 + $0x30] sm:$0xff]
    %v71 = vld [vmem:[#allocation5 + $0x38] sm:$0xff]
    %v72 = vld [vmem:[#allocation5 + $0x40] sm:$0xff]
    %v73 = vld [vmem:[#allocation5 + $0x48] sm:$0xff]
    %v74 = vld [vmem:[#allocation5 + $0x50] sm:$0xff]
    %v75 = vld [vmem:[#allocation5 + $0x58] sm:$0xff]
    %v76 = vld [vmem:[#allocation5 + $0x60] sm:$0xff]
    %v77 = vld [vmem:[#allocation5 + $0x68] sm:$0xff]
    %v78 = vld [vmem:[#allocation5 + $0x70] sm:$0xff]
    %v79 = vld [vmem:[#allocation5 + $0x78] sm:$0xff]
    %v80 = vld [vmem:[#allocation5 + $0x80] sm:$0xff]
    %v81 = vld [vmem:[#allocation5 + $0x88] sm:$0xff]
    %v82 = vld [vmem:[#allocation5 + $0x90] sm:$0xff]
    %v83 = vld [vmem:[#allocation5 + $0x98] sm:$0xff]
    %v84 = vld [vmem:[#allocation5 + $0xa0] sm:$0xff]
    %v85 = vld [vmem:[#allocation5 + $0xa8] sm:$0xff]
    %v86 = vld [vmem:[#allocation5 + $0xb0] sm:$0xff]
    %v87 = vld [vmem:[#allocation5 + $0xb8] sm:$0xff]
    %v88 = vld [vmem:[#allocation5 + $0xc0] sm:$0xff]
    %v89 = vld [vmem:[#allocation5 + $0xc8] sm:$0xff]
    %v90 = vld [vmem:[#allocation5 + $0xd0] sm:$0xff]
    %v91 = vld [vmem:[#allocation5 + $0xd8] sm:$0xff]
    %v92 = vld [vmem:[#allocation5 + $0xe0] sm:$0xff]
    %v93 = vld [vmem:[#allocation5 + $0xe8] sm:$0xff]
    %v94 = vld [vmem:[#allocation5 + $0xf0] sm:$0xff]
    %v95 = vld [vmem:[#allocation5 + $0xf8] sm:$0xff]
    %v98 = vunpack.c.l.b16 %v62
    %v99 = vunpack.c.h.b16 %v62
    %v100 = vunpack.c.l.b16 %v63
    %v101 = vunpack.c.h.b16 %v63
    %v102 = vpack.c.b16 %v100, %v98
    %v103 = vpack.c.b16 %v101, %v99
    %v138 = vunpack.c.l.b16 %v64
    %v139 = vunpack.c.h.b16 %v64
    %v140 = vunpack.c.l.b16 %v65
    %v141 = vunpack.c.h.b16 %v65
    %v142 = vunpack.c.l.b16 %v66
    %v143 = vunpack.c.h.b16 %v66
    %v144 = vunpack.c.l.b16 %v67
    %v145 = vunpack.c.h.b16 %v67
    %v146 = vunpack.c.l.b16 %v68
    %v147 = vunpack.c.h.b16 %v68
    %v148 = vunpack.c.l.b16 %v69
    %v149 = vunpack.c.h.b16 %v69
    %v150 = vunpack.c.l.b16 %v70
    %v151 = vunpack.c.h.b16 %v70
    %v152 = vunpack.c.l.b16 %v71
    %v153 = vunpack.c.h.b16 %v71
    %v154 = vunpack.c.l.b16 %v72
    %v155 = vunpack.c.h.b16 %v72
    %v156 = vunpack.c.l.b16 %v73
    %v157 = vunpack.c.h.b16 %v73
    %v158 = vunpack.c.l.b16 %v74
    %v159 = vunpack.c.h.b16 %v74
    %v160 = vunpack.c.l.b16 %v75
    %v161 = vunpack.c.h.b16 %v75
    %v162 = vunpack.c.l.b16 %v76
    %v163 = vunpack.c.h.b16 %v76
    %v164 = vunpack.c.l.b16 %v77
    %v165 = vunpack.c.h.b16 %v77
    %v166 = vunpack.c.l.b16 %v78
    %v167 = vunpack.c.h.b16 %v78
    %v168 = vunpack.c.l.b16 %v79
    %v169 = vunpack.c.h.b16 %v79
    %v170 = vunpack.c.l.b16 %v80
    %v171 = vunpack.c.h.b16 %v80
    %v172 = vunpack.c.l.b16 %v81
    %v173 = vunpack.c.h.b16 %v81
    %v174 = vunpack.c.l.b16 %v82
    %v175 = vunpack.c.h.b16 %v82
    %v176 = vunpack.c.l.b16 %v83
    %v177 = vunpack.c.h.b16 %v83
    %v178 = vunpack.c.l.b16 %v84
    %v179 = vunpack.c.h.b16 %v84
    %v180 = vunpack.c.l.b16 %v85
    %v181 = vunpack.c.h.b16 %v85
    %v182 = vunpack.c.l.b16 %v86
    %v183 = vunpack.c.h.b16 %v86
    %v184 = vunpack.c.l.b16 %v87
    %v185 = vunpack.c.h.b16 %v87
    %v186 = vunpack.c.l.b16 %v88
    %v187 = vunpack.c.h.b16 %v88
    %v188 = vunpack.c.l.b16 %v89
    %v189 = vunpack.c.h.b16 %v89
    %v190 = vunpack.c.l.b16 %v90
    %v191 = vunpack.c.h.b16 %v90
    %v192 = vunpack.c.l.b16 %v91
    %v193 = vunpack.c.h.b16 %v91
    %v194 = vunpack.c.l.b16 %v92
    %v195 = vunpack.c.h.b16 %v92
    %v196 = vunpack.c.l.b16 %v93
    %v197 = vunpack.c.h.b16 %v93
    %v198 = vunpack.c.l.b16 %v94
    %v199 = vunpack.c.h.b16 %v94
    %v200 = vunpack.c.l.b16 %v95
    %v201 = vunpack.c.h.b16 %v95
    %v202 = vpack.c.b16 %v140, %v138
    %v203 = vpack.c.b16 %v141, %v139
    %v204 = vpack.c.b16 %v144, %v142
    %v205 = vpack.c.b16 %v145, %v143
    %v206 = vpack.c.b16 %v148, %v146
    %v207 = vpack.c.b16 %v149, %v147
    %v208 = vpack.c.b16 %v152, %v150
    %v209 = vpack.c.b16 %v153, %v151
    %v210 = vpack.c.b16 %v156, %v154
    %v211 = vpack.c.b16 %v157, %v155
    %v212 = vpack.c.b16 %v160, %v158
    %v213 = vpack.c.b16 %v161, %v159
    %v214 = vpack.c.b16 %v164, %v162
    %v215 = vpack.c.b16 %v165, %v163
    %v216 = vpack.c.b16 %v168, %v166
    %v217 = vpack.c.b16 %v169, %v167
    %v218 = vpack.c.b16 %v172, %v170
    %v219 = vpack.c.b16 %v173, %v171
    %v220 = vpack.c.b16 %v176, %v174
    %v221 = vpack.c.b16 %v177, %v175
    %v222 = vpack.c.b16 %v180, %v178
    %v223 = vpack.c.b16 %v181, %v179
    %v224 = vpack.c.b16 %v184, %v182
    %v225 = vpack.c.b16 %v185, %v183
    %v226 = vpack.c.b16 %v188, %v186
    %v227 = vpack.c.b16 %v189, %v187
    %v228 = vpack.c.b16 %v192, %v190
    %v229 = vpack.c.b16 %v193, %v191
    %v230 = vpack.c.b16 %v196, %v194
    %v231 = vpack.c.b16 %v197, %v195
    %v232 = vpack.c.b16 %v200, %v198
    %v233 = vpack.c.b16 %v201, %v199
    %266 = vmatpush.bf16.msra.mxu0 %v216
    %267 = vmatpush.bf16.msra.mxu0 %v214
    %268 = vmatpush.bf16.msra.mxu0 %v212
    %269 = vmatpush.bf16.msra.mxu0 %v210
    %270 = vmatpush.bf16.msra.mxu0 %v208
    %271 = vmatpush.bf16.msra.mxu0 %v206
    %272 = vmatpush.bf16.msra.mxu0 %v204
    %273 = vmatpush.bf16.msra.mxu0 %v202
    %274 = vmatmul.bf16.gmra.mxu0 %v102
    %v275 = vpop.f32.mrf.mxu0
    %v276 = vadd.f32 0.0, %v275
    %v277 = vpop.f32.mrf.mxu0
    %v278 = vadd.f32 0.0, %v277
    %279 = vdwg.mxu0
    %280 = vmatpush.bf16.msra.mxu0 %v232
    %281 = vmatpush.bf16.msra.mxu0 %v230
    %282 = vmatpush.bf16.msra.mxu0 %v228
    %283 = vmatpush.bf16.msra.mxu0 %v226
    %284 = vmatpush.bf16.msra.mxu0 %v224
    %285 = vmatpush.bf16.msra.mxu0 %v222
    %286 = vmatpush.bf16.msra.mxu0 %v220
    %287 = vmatpush.bf16.msra.mxu0 %v218
    %288 = vmatmul.bf16.gmra.mxu0 %v103
    %v289 = vpop.f32.mrf.mxu0
    %v290 = vadd.f32 %v276, %v289
    %v291 = vpop.f32.mrf.mxu0
    %v292 = vadd.f32 %v278, %v291
    %293 = vdwg.mxu0
    %294 = vmatpush.bf16.msra.mxu0 %v217
    %295 = vmatpush.bf16.msra.mxu0 %v215
    %296 = vmatpush.bf16.msra.mxu0 %v213
    %297 = vmatpush.bf16.msra.mxu0 %v211
    %298 = vmatpush.bf16.msra.mxu0 %v209
    %299 = vmatpush.bf16.msra.mxu0 %v207
    %300 = vmatpush.bf16.msra.mxu0 %v205
    %301 = vmatpush.bf16.msra.mxu0 %v203
    %302 = vmatmul.bf16.gmra.mxu0 %v102
    %v303 = vpop.f32.mrf.mxu0
    %v304 = vadd.f32 0.0, %v303
    %v305 = vpop.f32.mrf.mxu0
    %v306 = vadd.f32 0.0, %v305
    %307 = vdwg.mxu0
    %308 = vmatpush.bf16.msra.mxu0 %v233
    %309 = vmatpush.bf16.msra.mxu0 %v231
    %310 = vmatpush.bf16.msra.mxu0 %v229
    %311 = vmatpush.bf16.msra.mxu0 %v227
    %312 = vmatpush.bf16.msra.mxu0 %v225
    %313 = vmatpush.bf16.msra.mxu0 %v223
    %314 = vmatpush.bf16.msra.mxu0 %v221
    %315 = vmatpush.bf16.msra.mxu0 %v219
    %316 = vmatmul.bf16.gmra.mxu0 %v103
    %v317 = vpop.f32.mrf.mxu0
    %v318 = vadd.f32 %v304, %v317
    %v319 = vpop.f32.mrf.mxu0
    %v320 = vadd.f32 %v306, %v319
    %321 = vdwg.mxu0
    %v322 = vld [vmem:[#allocation7] sm:$0xff]
    %v323 = vld [vmem:[#allocation7 + $0x8] sm:$0xff]
    %v324 = vld [vmem:[#allocation7 + $0x10] sm:$0xff]
    %v325 = vld [vmem:[#allocation7 + $0x18] sm:$0xff]
    %v326 = vld [vmem:[#allocation7 + $0x20] sm:$0xff]
    %v327 = vld [vmem:[#allocation7 + $0x28] sm:$0xff]
    %v328 = vld [vmem:[#allocation7 + $0x30] sm:$0xff]
    %v329 = vld [vmem:[#allocation7 + $0x38] sm:$0xff]
    %v330 = vld [vmem:[#allocation7 + $0x40] sm:$0xff]
    %v331 = vld [vmem:[#allocation7 + $0x48] sm:$0xff]
    %v332 = vld [vmem:[#allocation7 + $0x50] sm:$0xff]
    %v333 = vld [vmem:[#allocation7 + $0x58] sm:$0xff]
    %v334 = vld [vmem:[#allocation7 + $0x60] sm:$0xff]
    %v335 = vld [vmem:[#allocation7 + $0x68] sm:$0xff]
    %v336 = vld [vmem:[#allocation7 + $0x70] sm:$0xff]
    %v337 = vld [vmem:[#allocation7 + $0x78] sm:$0xff]
    %v338 = vld [vmem:[#allocation7 + $0x80] sm:$0xff]
    %v339 = vld [vmem:[#allocation7 + $0x88] sm:$0xff]
    %v340 = vld [vmem:[#allocation7 + $0x90] sm:$0xff]
    %v341 = vld [vmem:[#allocation7 + $0x98] sm:$0xff]
    %v342 = vld [vmem:[#allocation7 + $0xa0] sm:$0xff]
    %v343 = vld [vmem:[#allocation7 + $0xa8] sm:$0xff]
    %v344 = vld [vmem:[#allocation7 + $0xb0] sm:$0xff]
    %v345 = vld [vmem:[#allocation7 + $0xb8] sm:$0xff]
    %v346 = vld [vmem:[#allocation7 + $0xc0] sm:$0xff]
    %v347 = vld [vmem:[#allocation7 + $0xc8] sm:$0xff]
    %v348 = vld [vmem:[#allocation7 + $0xd0] sm:$0xff]
    %v349 = vld [vmem:[#allocation7 + $0xd8] sm:$0xff]
    %v350 = vld [vmem:[#allocation7 + $0xe0] sm:$0xff]
    %v351 = vld [vmem:[#allocation7 + $0xe8] sm:$0xff]
    %v352 = vld [vmem:[#allocation7 + $0xf0] sm:$0xff]
    %v353 = vld [vmem:[#allocation7 + $0xf8] sm:$0xff]
    %v386 = vunpack.c.l.b16 %v322
    %v387 = vunpack.c.h.b16 %v322
    %v388 = vunpack.c.l.b16 %v323
    %v389 = vunpack.c.h.b16 %v323
    %v390 = vunpack.c.l.b16 %v324
    %v391 = vunpack.c.h.b16 %v324
    %v392 = vunpack.c.l.b16 %v325
    %v393 = vunpack.c.h.b16 %v325
    %v394 = vunpack.c.l.b16 %v326
    %v395 = vunpack.c.h.b16 %v326
    %v396 = vunpack.c.l.b16 %v327
    %v397 = vunpack.c.h.b16 %v327
    %v398 = vunpack.c.l.b16 %v328
    %v399 = vunpack.c.h.b16 %v328
    %v400 = vunpack.c.l.b16 %v329
    %v401 = vunpack.c.h.b16 %v329
    %v402 = vunpack.c.l.b16 %v330
    %v403 = vunpack.c.h.b16 %v330
    %v404 = vunpack.c.l.b16 %v331
    %v405 = vunpack.c.h.b16 %v331
    %v406 = vunpack.c.l.b16 %v332
    %v407 = vunpack.c.h.b16 %v332
    %v408 = vunpack.c.l.b16 %v333
    %v409 = vunpack.c.h.b16 %v333
    %v410 = vunpack.c.l.b16 %v334
    %v411 = vunpack.c.h.b16 %v334
    %v412 = vunpack.c.l.b16 %v335
    %v413 = vunpack.c.h.b16 %v335
    %v414 = vunpack.c.l.b16 %v336
    %v415 = vunpack.c.h.b16 %v336
    %v416 = vunpack.c.l.b16 %v337
    %v417 = vunpack.c.h.b16 %v337
    %v418 = vunpack.c.l.b16 %v338
    %v419 = vunpack.c.h.b16 %v338
    %v420 = vunpack.c.l.b16 %v339
    %v421 = vunpack.c.h.b16 %v339
    %v422 = vunpack.c.l.b16 %v340
    %v423 = vunpack.c.h.b16 %v340
    %v424 = vunpack.c.l.b16 %v341
    %v425 = vunpack.c.h.b16 %v341
    %v426 = vunpack.c.l.b16 %v342
    %v427 = vunpack.c.h.b16 %v342
    %v428 = vunpack.c.l.b16 %v343
    %v429 = vunpack.c.h.b16 %v343
    %v430 = vunpack.c.l.b16 %v344
    %v431 = vunpack.c.h.b16 %v344
    %v432 = vunpack.c.l.b16 %v345
    %v433 = vunpack.c.h.b16 %v345
    %v434 = vunpack.c.l.b16 %v346
    %v435 = vunpack.c.h.b16 %v346
    %v436 = vunpack.c.l.b16 %v347
    %v437 = vunpack.c.h.b16 %v347
    %v438 = vunpack.c.l.b16 %v348
    %v439 = vunpack.c.h.b16 %v348
    %v440 = vunpack.c.l.b16 %v349
    %v441 = vunpack.c.h.b16 %v349
    %v442 = vunpack.c.l.b16 %v350
    %v443 = vunpack.c.h.b16 %v350
    %v444 = vunpack.c.l.b16 %v351
    %v445 = vunpack.c.h.b16 %v351
    %v446 = vunpack.c.l.b16 %v352
    %v447 = vunpack.c.h.b16 %v352
    %v448 = vunpack.c.l.b16 %v353
    %v449 = vunpack.c.h.b16 %v353
    %v450 = vpack.c.b16 %v388, %v386
    %v451 = vpack.c.b16 %v389, %v387
    %v452 = vpack.c.b16 %v392, %v390
    %v453 = vpack.c.b16 %v393, %v391
    %v454 = vpack.c.b16 %v396, %v394
    %v455 = vpack.c.b16 %v397, %v395
    %v456 = vpack.c.b16 %v400, %v398
    %v457 = vpack.c.b16 %v401, %v399
    %v458 = vpack.c.b16 %v404, %v402
    %v459 = vpack.c.b16 %v405, %v403
    %v460 = vpack.c.b16 %v408, %v406
    %v461 = vpack.c.b16 %v409, %v407
    %v462 = vpack.c.b16 %v412, %v410
    %v463 = vpack.c.b16 %v413, %v411
    %v464 = vpack.c.b16 %v416, %v414
    %v465 = vpack.c.b16 %v417, %v415
    %v466 = vpack.c.b16 %v420, %v418
    %v467 = vpack.c.b16 %v421, %v419
    %v468 = vpack.c.b16 %v424, %v422
    %v469 = vpack.c.b16 %v425, %v423
    %v470 = vpack.c.b16 %v428, %v426
    %v471 = vpack.c.b16 %v429, %v427
    %v472 = vpack.c.b16 %v432, %v430
    %v473 = vpack.c.b16 %v433, %v431
    %v474 = vpack.c.b16 %v436, %v434
    %v475 = vpack.c.b16 %v437, %v435
    %v476 = vpack.c.b16 %v440, %v438
    %v477 = vpack.c.b16 %v441, %v439
    %v478 = vpack.c.b16 %v444, %v442
    %v479 = vpack.c.b16 %v445, %v443
    %v480 = vpack.c.b16 %v448, %v446
    %v481 = vpack.c.b16 %v449, %v447
    %514 = vmatpush.bf16.msra.mxu0 %v464
    %515 = vmatpush.bf16.msra.mxu0 %v462
    %516 = vmatpush.bf16.msra.mxu0 %v460
    %517 = vmatpush.bf16.msra.mxu0 %v458
    %518 = vmatpush.bf16.msra.mxu0 %v456
    %519 = vmatpush.bf16.msra.mxu0 %v454
    %520 = vmatpush.bf16.msra.mxu0 %v452
    %521 = vmatpush.bf16.msra.mxu0 %v450
    %522 = vmatmul.bf16.gmra.mxu0 %v102
    %v523 = vpop.f32.mrf.mxu0
    %v524 = vadd.f32 0.0, %v523
    %v525 = vpop.f32.mrf.mxu0
    %v526 = vadd.f32 0.0, %v525
    %527 = vdwg.mxu0
    %528 = vmatpush.bf16.msra.mxu0 %v480
    %529 = vmatpush.bf16.msra.mxu0 %v478
    %530 = vmatpush.bf16.msra.mxu0 %v476
    %531 = vmatpush.bf16.msra.mxu0 %v474
    %532 = vmatpush.bf16.msra.mxu0 %v472
    %533 = vmatpush.bf16.msra.mxu0 %v470
    %534 = vmatpush.bf16.msra.mxu0 %v468
    %535 = vmatpush.bf16.msra.mxu0 %v466
    %536 = vmatmul.bf16.gmra.mxu0 %v103
    %v537 = vpop.f32.mrf.mxu0
    %v538 = vadd.f32 %v524, %v537
    %v539 = vpop.f32.mrf.mxu0
    %v540 = vadd.f32 %v526, %v539
    %541 = vdwg.mxu0
    %542 = vmatpush.bf16.msra.mxu0 %v465
    %543 = vmatpush.bf16.msra.mxu0 %v463
    %544 = vmatpush.bf16.msra.mxu0 %v461
    %545 = vmatpush.bf16.msra.mxu0 %v459
    %546 = vmatpush.bf16.msra.mxu0 %v457
    %547 = vmatpush.bf16.msra.mxu0 %v455
    %548 = vmatpush.bf16.msra.mxu0 %v453
    %549 = vmatpush.bf16.msra.mxu0 %v451
    %550 = vmatmul.bf16.gmra.mxu0 %v102
    %v551 = vpop.f32.mrf.mxu0
    %v552 = vadd.f32 0.0, %v551
    %v553 = vpop.f32.mrf.mxu0
    %v554 = vadd.f32 0.0, %v553
    %555 = vdwg.mxu0
    %556 = vmatpush.bf16.msra.mxu0 %v481
    %557 = vmatpush.bf16.msra.mxu0 %v479
    %558 = vmatpush.bf16.msra.mxu0 %v477
    %559 = vmatpush.bf16.msra.mxu0 %v475
    %560 = vmatpush.bf16.msra.mxu0 %v473
    %561 = vmatpush.bf16.msra.mxu0 %v471
    %562 = vmatpush.bf16.msra.mxu0 %v469
    %563 = vmatpush.bf16.msra.mxu0 %v467
    %564 = vmatmul.bf16.gmra.mxu0 %v103
    %v565 = vpop.f32.mrf.mxu0
    %v566 = vadd.f32 %v552, %v565
    %v567 = vpop.f32.mrf.mxu0
    %v568 = vadd.f32 %v554, %v567
    %569 = vdwg.mxu0
    %v570 = vmul.f32 %v290, %v290
    %v571 = vmul.f32 %v318, %v318
    %v572 = vmul.f32 %v292, %v292
    %v573 = vmul.f32 %v320, %v320
    %v574 = vmul.f32 %v538, %v538
    %v575 = vmul.f32 %v566, %v566
    %v576 = vmul.f32 %v540, %v540
    %v577 = vmul.f32 %v568, %v568
    %v578 = vadd.f32 %v570, %v574
    %v579 = vadd.f32 %v571, %v575
    %v580 = vadd.f32 %v572, %v576
    %v581 = vadd.f32 %v573, %v577
    %v582 = vrsqrt.pop %v578
    %v583 = vmul.f32 %v582, %v578
    %v584 = vmul.f32 %v583, %v582
    %v585 = vmul.f32 0.5, %v584
    %v586 = vsub.f32 1.5, %v585
    %v587 = vmul.f32 %v582, %v586
    %v588 = vmul.f32 %v578, %v587
    %vm589 = vcmp.eq.f32.partialorder %v578, inf
    %v590 = vsel %vm589, %v578, %v588
    %vm591 = vcmp.eq.f32.partialorder %v578, 0.0
    %v592 = vand.u32 %v578, 2147483648
    %v593 = vsel %vm591, %v592, %v590
    %v594 = vrsqrt.pop %v579
    %v595 = vmul.f32 %v594, %v579
    %v596 = vmul.f32 %v595, %v594
    %v597 = vmul.f32 0.5, %v596
    %v598 = vsub.f32 1.5, %v597
    %v599 = vmul.f32 %v594, %v598
    %v600 = vmul.f32 %v579, %v599
    %vm601 = vcmp.eq.f32.partialorder %v579, inf
    %v602 = vsel %vm601, %v579, %v600
    %vm603 = vcmp.eq.f32.partialorder %v579, 0.0
    %v604 = vand.u32 %v579, 2147483648
    %v605 = vsel %vm603, %v604, %v602
    %v606 = vrsqrt.pop %v580
    %v607 = vmul.f32 %v606, %v580
    %v608 = vmul.f32 %v607, %v606
    %v609 = vmul.f32 0.5, %v608
    %v610 = vsub.f32 1.5, %v609
    %v611 = vmul.f32 %v606, %v610
    %v612 = vmul.f32 %v580, %v611
    %vm613 = vcmp.eq.f32.partialorder %v580, inf
    %v614 = vsel %vm613, %v580, %v612
    %vm615 = vcmp.eq.f32.partialorder %v580, 0.0
    %v616 = vand.u32 %v580, 2147483648
    %v617 = vsel %vm615, %v616, %v614
    %v618 = vrsqrt.pop %v581
    %v619 = vmul.f32 %v618, %v581
    %v620 = vmul.f32 %v619, %v618
    %v621 = vmul.f32 0.5, %v620
    %v622 = vsub.f32 1.5, %v621
    %v623 = vmul.f32 %v618, %v622
    %v624 = vmul.f32 %v581, %v623
    %vm625 = vcmp.eq.f32.partialorder %v581, inf
    %v626 = vsel %vm625, %v581, %v624
    %vm627 = vcmp.eq.f32.partialorder %v581, 0.0
    %v628 = vand.u32 %v581, 2147483648
    %v629 = vsel %vm627, %v628, %v626
    %v630 = vsub.f32 %v593, %v617
    %v631 = vsub.f32 %v605, %v629
    %v632 = vand.u32 2147483647, %v630
    %v633 = vand.u32 2147483647, %v631
    %v634 = vrot.slane %v632, 4
    %v635 = vadd.f32 %v632, %v634
    %v636 = vrot.slane %v635, 2
    %v637 = vadd.f32 %v635, %v636
    %v638 = vrot.slane %v637, 1
    %v639 = vadd.f32 %v637, %v638
    %v640 = vrot.slane %v633, 4
    %v641 = vadd.f32 %v633, %v640
    %v642 = vrot.slane %v641, 2
    %v643 = vadd.f32 %v641, %v642
    %v644 = vrot.slane %v643, 1
    %v645 = vadd.f32 %v643, %v644
    %v648 = vrot.slane %v645, 7
    %vm649 = vcmask 1040384
    %v650 = vsel %vm649, %v639, %v648
    %v652 = vlaneseq
    %vm653 = vcmp.ge.s32.totalorder %v652, 0
    %vm654 = vcmp.lt.s32.totalorder %v652, 256
    %vm655 = vmand %vm653, %vm654
    %656 = vst.msk [vmem:[#allocation8] sm:$0x3] %vm655, %v650
    // Predicated region
    $region26: #{tpu_custom_call.1} parent=1 // pred_check
      _
    $region27: #{tpu_custom_call.1} parent=1 // pred_check_branch
      %658 = sbr.rel (0) target = $region29
    $region28: #{tpu_custom_call.1} parent=1 // pred_region
      %660 = vsyncadd [#allocation4], 0
      %s662 = sshll.u32 [#allocation8], 4
      %s663 = int_to_ptr.vmem [resolvable:$true] %s662
      %s664 = sshll.u32 %s3, 4
      %s665 = int_to_ptr.hbm [resolvable:$true] %s664
      %667 = dma.vmem_to_hbm [thread:$0]  %s663, 32, %s665, [#allocation4]
    $region29: #{tpu_custom_call.1} parent=1 // pred_fallthru
      _
    // Predicated region
    $region30: #{tpu_custom_call.1} parent=1 // pred_check
      _
    $region31: #{tpu_custom_call.1} parent=1 // pred_check_branch
      %669 = sbr.rel (0) target = $region33
    $region32: #{tpu_custom_call.1} parent=1 // pred_region
      %671 = dma.done [#allocation4], 32
    $region33: #{tpu_custom_call.1} parent=1 // pred_fallthru
      _
    %672 = vsyncpa [#allocation3], 1
    %673 = vsyncpa [#allocation6], 1
    %674 = vsyncpa [#allocation4], 1

</llo_original>
